<compile_context>
chip_gen: v7x
topology: tpu7x:2x2x1
jax: 0.10.0
libtpu: 0.0.40
codegen_flags: <defaults>
</compile_context>

<pallas_src>
import math
from functools import partial

import jax
import jax.numpy as jnp
from jax.experimental import pallas as pl
from jax.experimental.pallas import tpu as pltpu


# ----------------------------------------------------------------------------
# Zero-copy path: output aliases input, kernel body is an ordering pin only.
# ----------------------------------------------------------------------------
def _identity_alias_kernel(x_hbm, o_hbm, flag_smem):
    # Output buffer aliases the input buffer (input_output_aliases={0: 0}), so
    # the result is already in place -- no data movement needed.  Write one
    # SMEM scalar so the body is non-empty; this acts as the ordering pin
    # (the guaranteed-lowerable equivalent of pltpu.touch(o_hbm)).
    del x_hbm, o_hbm
    flag_smem[0] = jnp.int32(1)


@partial(jax.jit, donate_argnums=0)
def vision_transformer_forward_inplace(x: jax.Array) -> jax.Array:
    """Identity forward with zero HBM traffic (caller donates `x`)."""
    if math.prod(x.shape) == 0:
        return x
    return pl.pallas_call(
        _identity_alias_kernel,
        out_shape=jax.ShapeDtypeStruct(x.shape, x.dtype),
        in_specs=[pl.BlockSpec(memory_space=pl.ANY)],   # raw HBM ref
        out_specs=pl.BlockSpec(memory_space=pl.ANY),    # aliased onto the input
        scratch_shapes=[pltpu.SMEM((1,), jnp.int32)],
        input_output_aliases={0: 0},
        compiler_params=pltpu.CompilerParams(has_side_effects=True),
    )(x)


# ----------------------------------------------------------------------------
# Fallback copy path: chunked HBM -> HBM DMA (input preserved).
# ----------------------------------------------------------------------------
def _chunk_starts_sizes(n_rows: int, n_chunks: int, align: int):
    """Split [0, n_rows) into <= n_chunks contiguous (start, size) pieces,
    interior boundaries rounded down to multiples of `align`."""
    n_chunks = max(1, min(n_chunks, (n_rows // max(align, 1)) or 1))
    bounds = []
    for i in range(n_chunks + 1):
        b = (i * n_rows) // n_chunks
        if 0 < i < n_chunks and align > 1:
            b -= b % align
        bounds.append(b)
    out = [(s, e - s) for s, e in zip(bounds[:-1], bounds[1:]) if e > s]
    return out or [(0, n_rows)]


def _make_dma_copy_kernel(chunks):
    """chunks=None -> one whole-array DMA; else list of (start, size) along dim 0."""

    def kernel(x_hbm, o_hbm, sem):
        if chunks is None:
            cp = pltpu.make_async_copy(x_hbm, o_hbm, sem.at[0])
            cp.start()
            cp.wait()
            return
        copies = [
            pltpu.make_async_copy(
                x_hbm.at[pl.ds(start, size)],
                o_hbm.at[pl.ds(start, size)],
                sem.at[i],
            )
            for i, (start, size) in enumerate(chunks)
        ]
        for c in copies:   # issue all DMAs (concurrent in flight)
            c.start()
        for c in copies:   # then drain
            c.wait()

    return kernel


@jax.jit
def vision_transformer_forward(x: jax.Array) -> jax.Array:
    """Identity forward as an HBM->HBM DMA copy (no VMEM, no grid)."""
    orig_shape = x.shape
    total = math.prod(orig_shape)
    if total == 0:
        return x

    itemsize = jnp.dtype(x.dtype).itemsize
    total_bytes = total * itemsize

    # One DMA below ~1 MiB; one extra descriptor per MiB, capped at 8.
    n_chunks = int(max(1, min(8, total_bytes // (1 << 20))))

    if n_chunks == 1:
        xk, chunks, n_sems = x, None, 1          # single whole-array DMA
    elif total % 128 == 0:
        rows = total // 128                       # lane-dense [rows, 128] slab
        xk = x.reshape(rows, 128)
        chunks = _chunk_starts_sizes(rows, n_chunks, align=8)
        n_sems = len(chunks)
    else:
        xk = x.reshape(total)                     # flat 1-D; 512 B boundaries
        chunks = _chunk_starts_sizes(total, n_chunks, align=max(1, 512 // itemsize))
        n_sems = len(chunks)

    out = pl.pallas_call(
        _make_dma_copy_kernel(chunks),
        out_shape=jax.ShapeDtypeStruct(xk.shape, x.dtype),
        in_specs=[pl.BlockSpec(memory_space=pl.ANY)],   # raw HBM ref, no auto-DMA
        out_specs=pl.BlockSpec(memory_space=pl.ANY),    # written only by DMA
        scratch_shapes=[pltpu.SemaphoreType.DMA((n_sems,))],
        compiler_params=pltpu.CompilerParams(has_side_effects=True),
        cost_estimate=pl.CostEstimate(
            flops=0, transcendentals=0, bytes_accessed=2 * total_bytes
        ),
    )(xk)

    return out.reshape(orig_shape) if out.shape != orig_shape else out


if __name__ == "__main__":
    import warnings
    import numpy as np

    # Donation is a perf hint only; silence any "not usable" note defensively.
    warnings.filterwarnings("ignore", message="Some donated buffers were not usable")

    shape = (2, 4, 16, 16)

    # --- Path 1: DMA-copy identity (input preserved) -------------------------
    x = jax.random.normal(jax.random.PRNGKey(0), shape, dtype=jnp.float32)
    y = vision_transformer_forward(x)
    jax.block_until_ready(y)
    assert y.shape == x.shape and y.dtype == x.dtype
    # Bit-exact comparison (NaN-safe identity check).
    assert np.asarray(y).tobytes() == np.asarray(x).tobytes()

    # --- Path 2: zero-copy identity via aliasing + buffer donation -----------
    x2 = jax.random.normal(jax.random.PRNGKey(0), shape, dtype=jnp.float32)
    x2_host = np.asarray(x2).copy()          # snapshot before x2 is donated
    y2 = vision_transformer_forward_inplace(x2)
    jax.block_until_ready(y2)
    # NOTE: x2 is donated (invalid) past this point; compare against snapshot.
    assert y2.shape == x2_host.shape and y2.dtype == x2_host.dtype
    assert np.asarray(y2).tobytes() == x2_host.tobytes()

    print("KERNEL_OK")
</pallas_src>

<mosaic_0001>
module attributes {stable_mosaic.version = 11 : i64} {
  func.func @kernel(%arg0: memref<2x4x16x16xf32, #tpu.memory_space<any>>, %arg1: memref<2x4x16x16xf32, #tpu.memory_space<any>>, %arg2: memref<1x!tpu.dma_semaphore, #tpu.memory_space<semaphore_mem>>) attributes {dimension_semantics = [], scalar_prefetch = 0 : i64, scratch_operands = 1 : i64, tpu.core_type = #tpu.core_type<tc>} {
    %c0_i32 = arith.constant 0 : i32
    %0 = tpu.memref_slice %arg2[%c0_i32] : memref<1x!tpu.dma_semaphore, #tpu.memory_space<semaphore_mem>> -> memref<1x!tpu.dma_semaphore, #tpu.memory_space<semaphore_mem>>
    %1 = tpu.memref_squeeze %0 : memref<1x!tpu.dma_semaphore, #tpu.memory_space<semaphore_mem>> -> memref<!tpu.dma_semaphore, #tpu.memory_space<semaphore_mem>>
    tpu.enqueue_dma source(%arg0 : memref<2x4x16x16xf32, #tpu.memory_space<any>>) target(%arg1 : memref<2x4x16x16xf32, #tpu.memory_space<any>>) target_semaphore(%1 : memref<!tpu.dma_semaphore, #tpu.memory_space<semaphore_mem>>)
    %c0_i32_0 = arith.constant 0 : i32
    %2 = tpu.memref_slice %arg2[%c0_i32_0] : memref<1x!tpu.dma_semaphore, #tpu.memory_space<semaphore_mem>> -> memref<1x!tpu.dma_semaphore, #tpu.memory_space<semaphore_mem>>
    %3 = tpu.memref_squeeze %2 : memref<1x!tpu.dma_semaphore, #tpu.memory_space<semaphore_mem>> -> memref<!tpu.dma_semaphore, #tpu.memory_space<semaphore_mem>>
    tpu.wait_dma2 semaphore(%3 : memref<!tpu.dma_semaphore, #tpu.memory_space<semaphore_mem>>) src(%arg0 : memref<2x4x16x16xf32, #tpu.memory_space<any>>) dst(%arg1 : memref<2x4x16x16xf32, #tpu.memory_space<any>>)
    return
  }
}

</mosaic_0001>

<llo_original>
// kernel: vision_transformer_forward.1
$region0: #{vision_transformer_forward.1}
  #allocation0 [shape = 'u32[]', space=smem, size = 0x4, offset = 0x4, fixed_abs, tag = 'smem constant byte address 0x4 - core index']
  #allocation1 [shape = 'u32[144,128]{1,0:T(1,128)}', space=vmem, size = 0x12000, scoped, tag = 'internal scratch']
  #allocation2 [shape = 's32[1]{0}', space=sflag, size = 0x4, scoped, tag = 'scratch operand']
  #allocation3 [shape = 's32[]', space=sflag, size = 0x4, offset = 0, fixed_abs, tag = 'sflag constant byte address 0x0 - dummy sync flag']
  #allocation4 [shape = 'u32[0]{0}', space=smem, size = 0, offset = 0, fixed_abs, tag = 'smem constant byte address 0x0 - null']
  %s0 = inlined_call_operand.hbm [shape: f32[2,4,16,16], index: 0, kind: input, shape index: {}]
  %s1 = inlined_call_operand.hbm [shape: f32[2,4,16,16], index: 1, kind: output, shape index: {}]
  %s2 = sld [smem:[#allocation0]]
  $region2: #{vision_transformer_forward.1} parent=0
    _
  %s4 = ssub.s32 1, %s2
  %s5 = scalar_select 0, %s4, %s2
  %s7 = sshll.u32 1, 14
  %s8 = sxor.u32 4294967295, %s7
  %s11 = sshll.u32 3, 24
  %s12 = sxor.u32 4294967295, %s11
  %s13 = sand.u32 0, %s12
  %s15 = sor.u32 %s13, 0
  %18 = dma.general %s0, 2048, %s1, [#allocation2], [#allocation3], [#allocation4], %s15, 0
  %s19 = smul.u32 2, 4
  %s20 = smul.u32 %s19, 16
  %s21 = smul.u32 %s20, 1
  %s22 = sshll.u32 %s21, 4
  %23 = dma.done [#allocation2], %s22
  %24 = vsyncmov [#allocation2]
  %s25 = vpop.sfrf %24
  %p26 = scmp.eq.s32.totalorder %s25, 0
  %p27 = pneg %p26
  %29 = shalt.err (%p27)

</llo_original>
